<compile_context>
chip_gen: v6e
topology: v6e:2x2x1
jax: 0.10.0
libtpu: 0.0.40
codegen_flags: <defaults>
</compile_context>

<pallas_src>
import jax
import jax.numpy as jnp
from jax import lax
from jax.experimental import pallas as pl
from jax.experimental.pallas import tpu as pltpu


# ---------------------------------------------------------------------------
# Kernel
# ---------------------------------------------------------------------------
def _basic_block_kernel(x_ref, w1_ref, b1_ref, w2_ref, b2_ref, o_ref):
    """Fused BasicBlock for a (BT, H, W*C) activation block.

    x_ref  : (BT, H, W*C) f32   lane-dense channels-last activations
    w*_ref : (W*C, 3*W*C) bf16  banded conv weights (BN scale folded in)
    b*_ref : (1, W*C)     f32   folded BN bias, broadcast over W
    o_ref  : (BT, H, W*C) f32
    """
    BT, H, WC = o_ref.shape
    R = BT * H

    x = x_ref[...].reshape(R, WC)  # (R, WC) f32; leading-dim merge is free.

    # Per-image row index for the H zero-padding masks (shared by both conv
    # stages).  Pure VPU work, nothing on the MXU critical path.
    h_idx = lax.broadcasted_iota(jnp.int32, (BT, H, WC), 1).reshape(R, WC)
    top = h_idx == 0          # first row of each image
    bot = h_idx == H - 1      # last row of each image

    def conv3x3_bn(inp_f32, w_ref, bias_ref):
        # One banded matmul covers all 9 taps (dx + W zero-padding are folded
        # into the band matrix); the three dy tap groups land in lane-aligned
        # column slices.  bf16 operands, f32 accumulation.
        y = jnp.dot(inp_f32.astype(jnp.bfloat16), w_ref[...],
                    preferred_element_type=jnp.float32)
        y0, y1, y2 = y[:, :WC], y[:, WC:2 * WC], y[:, 2 * WC:]
        # dy = 0 tap: out[h] += y0[h-1];  dy = 2 tap: out[h] += y2[h+1].
        # XLU rolls instead of shift matmuls; the wrapped rows are exactly the
        # rows masked to zero (conv H padding / batch-element boundaries).
        dn = jnp.where(top, 0.0, pltpu.roll(y0, 1, 0))
        up = jnp.where(bot, 0.0, pltpu.roll(y2, R - 1, 0))
        return bias_ref[...] + y1 + dn + up

    h1 = jnp.maximum(conv3x3_bn(x, w1_ref, b1_ref), 0.0)     # conv1+bn1+relu
    h2 = conv3x3_bn(h1, w2_ref, b2_ref) + x                  # conv2+bn2+skip
    o_ref[...] = jnp.maximum(h2, 0.0).reshape(BT, H, WC).astype(o_ref.dtype)


# ---------------------------------------------------------------------------
# Parameter preparation (runs ONCE per set of weights, off the hot path)
# ---------------------------------------------------------------------------
def _fold_bn(gamma, beta, mean, var, eps=1e-5):
    scale = gamma / jnp.sqrt(var + eps)
    bias = beta - mean * scale
    return scale, bias


def _banded_conv_weights(w_hwio, width):
    """Fold the dx taps + zero W-padding of a 3x3 conv into band matrices.

    w_hwio: (3, 3, Cin, Cout), BN scale already folded into Cout.
    Returns (W*Cin, 3*W*Cout) f32, where column group dy holds B_dy with
      B_dy[w_in*Cin + ci, w*Cout + co] = w_hwio[dy, dx, ci, co]
    for w_in = w + dx - 1 when 0 <= w_in < width (zero otherwise).
    """
    cin, cout = w_hwio.shape[2], w_hwio.shape[3]
    dx = jnp.arange(3).reshape(3, 1, 1)
    w_in = jnp.arange(width).reshape(1, width, 1)
    w_out = jnp.arange(width).reshape(1, 1, width)
    sel = (w_in == w_out + dx - 1).astype(jnp.float32)        # (3, W, W)
    b = jnp.einsum("dab,ydio->yaibo", sel, w_hwio.astype(jnp.float32))
    b = b.reshape(3, width * cin, width * cout)               # (dy, W*Cin, W*Cout)
    return jnp.transpose(b, (1, 0, 2)).reshape(width * cin, 3 * width * cout)


def prepare_basic_block_params(params, width, eps=1e-5):
    """BN folding + banded-weight construction; call once and reuse."""
    cout, cin = params["w1"].shape[0], params["w1"].shape[1]
    assert cout == cin, "stride=1 BasicBlock needs inplanes == planes"

    s1, b1 = _fold_bn(*params["bn1"], eps=eps)
    s2, b2 = _fold_bn(*params["bn2"], eps=eps)
    # OIHW -> HWIO with the BN scale folded into the output channels.
    w1 = jnp.transpose(params["w1"], (2, 3, 1, 0)).astype(jnp.float32) * s1
    w2 = jnp.transpose(params["w2"], (2, 3, 1, 0)).astype(jnp.float32) * s2
    return {
        "wb1": _banded_conv_weights(w1, width).astype(jnp.bfloat16),
        "wb2": _banded_conv_weights(w2, width).astype(jnp.bfloat16),
        "bias1": jnp.tile(b1, width).reshape(1, width * cout).astype(jnp.float32),
        "bias2": jnp.tile(b2, width).reshape(1, width * cout).astype(jnp.float32),
    }


# ---------------------------------------------------------------------------
# Hot path
# ---------------------------------------------------------------------------
def _pick_batch_tile(n, h, target_rows=128):
    """Images per grid step: ~128 MXU rows, but keep >=2 steps when N >= 2
    so both v7x TensorCores get work (no-op on single-TC v5e/v6e)."""
    bt = min(max(1, target_rows // h), n)
    if n >= 2 and n // bt < 2:
        bt = max(1, n // 2)
    while n % bt != 0:
        bt -= 1
    return bt


def _check_vmem_budget(wc, h, bt):
    """Guard the dense banded-weight formulation against VMEM (64 MiB on v7x)."""
    w_bytes = 2 * (wc * 3 * wc) * 2          # two bf16 band matrices
    act_bytes = 2 * (bt * h * wc) * 4        # input + output block, f32
    need = 2 * (w_bytes + act_bytes)         # default double-buffering
    try:
        cap = pltpu.get_tpu_info().vmem_capacity_bytes
    except Exception:
        cap = 64 * 1024 * 1024               # assume tightest gen (v7x)
    if need > int(0.8 * cap):
        # TODO(synk): fall back to a W-tiled / per-tap accumulating conv for
        # large W*C instead of the dense banded-weight formulation.
        raise NotImplementedError(
            f"banded-weight BasicBlock needs ~{need / 2**20:.1f} MiB VMEM "
            f"(budget ~{0.8 * cap / 2**20:.0f} MiB); tile W for this shape")


def basic_block_apply(x_lane, prepped):
    """Fused BasicBlock on lane-dense activations (N, H, W*C) -> (N, H, W*C).

    Keep activations in this layout across stacked blocks; only convert to/from
    NCHW at network boundaries.
    """
    N, H, WC = x_lane.shape
    bt = _pick_batch_tile(N, H)
    _check_vmem_budget(WC, H, bt)

    return pl.pallas_call(
        _basic_block_kernel,
        out_shape=jax.ShapeDtypeStruct((N, H, WC), jnp.float32),
        grid=(N // bt,),
        in_specs=[
            pl.BlockSpec((bt, H, WC), lambda n: (n, 0, 0)),
            pl.BlockSpec((WC, 3 * WC), lambda n: (0, 0)),
            pl.BlockSpec((1, WC), lambda n: (0, 0)),
            pl.BlockSpec((WC, 3 * WC), lambda n: (0, 0)),
            pl.BlockSpec((1, WC), lambda n: (0, 0)),
        ],
        out_specs=pl.BlockSpec((bt, H, WC), lambda n: (n, 0, 0)),
        compiler_params=pltpu.CompilerParams(
            dimension_semantics=("parallel",)),
    )(x_lane, prepped["wb1"], prepped["bias1"], prepped["wb2"], prepped["bias2"])


def basic_block_forward(x_nchw, prepped):
    """NCHW boundary wrapper (stride=1, no downsample). NCHW in / NCHW out."""
    N, C, H, W = x_nchw.shape
    # Boundary-only layout change; stacked blocks should stay lane-dense.
    x = jnp.transpose(x_nchw, (0, 2, 3, 1)).reshape(N, H, W * C)
    out = basic_block_apply(x.astype(jnp.float32), prepped)
    return jnp.transpose(out.reshape(N, H, W, C), (0, 3, 1, 2))


# ---------------------------------------------------------------------------
# Pure-JAX reference (for correctness checking)
# ---------------------------------------------------------------------------
def _reference_forward(x_nchw, params):
    x = jnp.transpose(x_nchw, (0, 2, 3, 1)).astype(jnp.float32)
    dn = ("NHWC", "HWIO", "NHWC")

    def conv_bn(inp, w_oihw, bn):
        w = jnp.transpose(w_oihw, (2, 3, 1, 0))
        y = lax.conv_general_dilated(inp, w, (1, 1), [(1, 1), (1, 1)],
                                     dimension_numbers=dn)
        s, b = _fold_bn(*bn)
        return y * s + b

    out = jax.nn.relu(conv_bn(x, params["w1"], params["bn1"]))
    out = conv_bn(out, params["w2"], params["bn2"]) + x
    out = jax.nn.relu(out)
    return jnp.transpose(out, (0, 3, 1, 2))


if __name__ == "__main__":
    # Shapes consistent with BasicBlock(inplanes=8, planes=8, stride=1);
    # W * C = 128 makes every load/store and MXU column group lane-dense.
    N, C, H, W = 2, 8, 16, 16
    key = jax.random.PRNGKey(0)
    k = jax.random.split(key, 11)

    x = jax.random.normal(k[0], (N, C, H, W), jnp.float32)

    params = {
        # conv weights in PyTorch OIHW layout (Cout, Cin, 3, 3), bias=False.
        "w1": jax.random.normal(k[1], (C, C, 3, 3), jnp.float32) * 0.1,
        "w2": jax.random.normal(k[2], (C, C, 3, 3), jnp.float32) * 0.1,
        # BatchNorm (eval mode): gamma, beta, running_mean, running_var.
        "bn1": (jax.random.normal(k[3], (C,), jnp.float32) * 0.1 + 1.0,
                jax.random.normal(k[4], (C,), jnp.float32) * 0.1,
                jax.random.normal(k[5], (C,), jnp.float32) * 0.1,
                jax.random.uniform(k[6], (C,), jnp.float32, 0.5, 1.5)),
        "bn2": (jax.random.normal(k[7], (C,), jnp.float32) * 0.1 + 1.0,
                jax.random.normal(k[8], (C,), jnp.float32) * 0.1,
                jax.random.normal(k[9], (C,), jnp.float32) * 0.1,
                jax.random.uniform(k[10], (C,), jnp.float32, 0.5, 1.5)),
    }

    # Weight prep runs once, off the per-call hot path.
    prepped = prepare_basic_block_params(params, W)
    prepped = jax.tree_util.tree_map(jax.block_until_ready, prepped)

    fwd = jax.jit(basic_block_forward)
    out = jax.block_until_ready(fwd(x, prepped))
    ref = jax.block_until_ready(_reference_forward(x, params))

    assert out.shape == (N, C, H, W), out.shape
    # Tolerance covers bf16 MXU operands (f32 accumulation) vs the f32 reference.
    err = float(jnp.max(jnp.abs(out - ref)))
    assert jnp.allclose(out, ref, atol=5e-2, rtol=5e-2), err

    print("KERNEL_OK")
</pallas_src>

<mosaic_0001>
module attributes {stable_mosaic.version = 11 : i64} {
  func.func @_basic_block_kernel(%arg0: i32, %arg1: memref<1x16x128xf32, #tpu.memory_space<vmem>>, %arg2: memref<128x384xbf16, #tpu.memory_space<vmem>>, %arg3: memref<1x128xf32, #tpu.memory_space<vmem>>, %arg4: memref<128x384xbf16, #tpu.memory_space<vmem>>, %arg5: memref<1x128xf32, #tpu.memory_space<vmem>>, %arg6: memref<1x16x128xf32, #tpu.memory_space<vmem>>) attributes {dimension_semantics = [#tpu.dimension_semantics<parallel>], iteration_bounds = array<i64: 2>, scalar_prefetch = 0 : i64, scratch_operands = 0 : i64, tpu.core_type = #tpu.core_type<tc>, window_params = [{transform_indices = @transform_0, window_bounds = array<i64: 1, 16, 128>}, {pipeline_mode = #tpu.pipeline_mode<synchronous>, transform_indices = @transform_1, window_bounds = array<i64: 128, 384>}, {pipeline_mode = #tpu.pipeline_mode<synchronous>, transform_indices = @transform_2, window_bounds = array<i64: 1, 128>}, {pipeline_mode = #tpu.pipeline_mode<synchronous>, transform_indices = @transform_3, window_bounds = array<i64: 128, 384>}, {pipeline_mode = #tpu.pipeline_mode<synchronous>, transform_indices = @transform_4, window_bounds = array<i64: 1, 128>}, {transform_indices = @transform_5, window_bounds = array<i64: 1, 16, 128>}]} {
    %c0 = arith.constant 0 : index
    %c0_0 = arith.constant 0 : index
    %c0_1 = arith.constant 0 : index
    %0 = vector.load %arg1[%c0, %c0_0, %c0_1] : memref<1x16x128xf32, #tpu.memory_space<vmem>>, vector<1x16x128xf32>
    %1 = vector.shape_cast %0 : vector<1x16x128xf32> to vector<16x128xf32>
    %2 = tpu.iota {dimensions = array<i32: 1>} : vector<1x16x128xi32>
    %3 = vector.shape_cast %2 : vector<1x16x128xi32> to vector<16x128xi32>
    %c0_i32 = arith.constant 0 : i32
    %4 = vector.broadcast %c0_i32 : i32 to vector<16x128xi32>
    %5 = arith.cmpi eq, %3, %4 : vector<16x128xi32>
    %c15_i32 = arith.constant 15 : i32
    %6 = vector.broadcast %c15_i32 : i32 to vector<16x128xi32>
    %7 = arith.cmpi eq, %3, %6 : vector<16x128xi32>
    %8 = arith.truncf %1 : vector<16x128xf32> to vector<16x128xbf16>
    %c0_2 = arith.constant 0 : index
    %c0_3 = arith.constant 0 : index
    %9 = vector.load %arg2[%c0_2, %c0_3] : memref<128x384xbf16, #tpu.memory_space<vmem>>, vector<128x384xbf16>
    %cst = arith.constant dense<0.000000e+00> : vector<16x384xf32>
    %10 = tpu.matmul %8, %9, %cst {dimension_numbers = #tpu.dot_dimension_numbers<[1], [0], [0], [1], [0, 0, 1, 1], [], []>} : vector<16x128xbf16>, vector<128x384xbf16>, vector<16x384xf32> -> vector<16x384xf32>
    %11 = vector.extract_strided_slice %10 {offsets = [0, 0], sizes = [16, 128], strides = [1, 1]} : vector<16x384xf32> to vector<16x128xf32>
    %12 = vector.extract_strided_slice %10 {offsets = [0, 128], sizes = [16, 128], strides = [1, 1]} : vector<16x384xf32> to vector<16x128xf32>
    %13 = vector.extract_strided_slice %10 {offsets = [0, 256], sizes = [16, 128], strides = [1, 1]} : vector<16x384xf32> to vector<16x128xf32>
    %c1_i32 = arith.constant 1 : i32
    %14 = tpu.dynamic_rotate %11 by %c1_i32 dim 0 : vector<16x128xf32>, i32 -> vector<16x128xf32>
    %cst_4 = arith.constant 0.000000e+00 : f32
    %15 = vector.broadcast %cst_4 : f32 to vector<16x128xf32>
    %16 = arith.select %5, %15, %14 : vector<16x128xi1>, vector<16x128xf32>
    %c15_i32_5 = arith.constant 15 : i32
    %17 = tpu.dynamic_rotate %13 by %c15_i32_5 dim 0 : vector<16x128xf32>, i32 -> vector<16x128xf32>
    %cst_6 = arith.constant 0.000000e+00 : f32
    %18 = vector.broadcast %cst_6 : f32 to vector<16x128xf32>
    %19 = arith.select %7, %18, %17 : vector<16x128xi1>, vector<16x128xf32>
    %c0_7 = arith.constant 0 : index
    %c0_8 = arith.constant 0 : index
    %20 = vector.load %arg3[%c0_7, %c0_8] : memref<1x128xf32, #tpu.memory_space<vmem>>, vector<1x128xf32>
    %21 = vector.broadcast %20 : vector<1x128xf32> to vector<16x128xf32>
    %22 = arith.addf %21, %12 : vector<16x128xf32>
    %23 = arith.addf %22, %16 : vector<16x128xf32>
    %24 = arith.addf %23, %19 : vector<16x128xf32>
    %cst_9 = arith.constant 0.000000e+00 : f32
    %25 = vector.broadcast %cst_9 : f32 to vector<16x128xf32>
    %26 = arith.maximumf %24, %25 : vector<16x128xf32>
    %27 = arith.truncf %26 : vector<16x128xf32> to vector<16x128xbf16>
    %c0_10 = arith.constant 0 : index
    %c0_11 = arith.constant 0 : index
    %28 = vector.load %arg4[%c0_10, %c0_11] : memref<128x384xbf16, #tpu.memory_space<vmem>>, vector<128x384xbf16>
    %cst_12 = arith.constant dense<0.000000e+00> : vector<16x384xf32>
    %29 = tpu.matmul %27, %28, %cst_12 {dimension_numbers = #tpu.dot_dimension_numbers<[1], [0], [0], [1], [0, 0, 1, 1], [], []>} : vector<16x128xbf16>, vector<128x384xbf16>, vector<16x384xf32> -> vector<16x384xf32>
    %30 = vector.extract_strided_slice %29 {offsets = [0, 0], sizes = [16, 128], strides = [1, 1]} : vector<16x384xf32> to vector<16x128xf32>
    %31 = vector.extract_strided_slice %29 {offsets = [0, 128], sizes = [16, 128], strides = [1, 1]} : vector<16x384xf32> to vector<16x128xf32>
    %32 = vector.extract_strided_slice %29 {offsets = [0, 256], sizes = [16, 128], strides = [1, 1]} : vector<16x384xf32> to vector<16x128xf32>
    %c1_i32_13 = arith.constant 1 : i32
    %33 = tpu.dynamic_rotate %30 by %c1_i32_13 dim 0 : vector<16x128xf32>, i32 -> vector<16x128xf32>
    %cst_14 = arith.constant 0.000000e+00 : f32
    %34 = vector.broadcast %cst_14 : f32 to vector<16x128xf32>
    %35 = arith.select %5, %34, %33 : vector<16x128xi1>, vector<16x128xf32>
    %c15_i32_15 = arith.constant 15 : i32
    %36 = tpu.dynamic_rotate %32 by %c15_i32_15 dim 0 : vector<16x128xf32>, i32 -> vector<16x128xf32>
    %cst_16 = arith.constant 0.000000e+00 : f32
    %37 = vector.broadcast %cst_16 : f32 to vector<16x128xf32>
    %38 = arith.select %7, %37, %36 : vector<16x128xi1>, vector<16x128xf32>
    %c0_17 = arith.constant 0 : index
    %c0_18 = arith.constant 0 : index
    %39 = vector.load %arg5[%c0_17, %c0_18] : memref<1x128xf32, #tpu.memory_space<vmem>>, vector<1x128xf32>
    %40 = vector.broadcast %39 : vector<1x128xf32> to vector<16x128xf32>
    %41 = arith.addf %40, %31 : vector<16x128xf32>
    %42 = arith.addf %41, %35 : vector<16x128xf32>
    %43 = arith.addf %42, %38 : vector<16x128xf32>
    %44 = arith.addf %43, %1 : vector<16x128xf32>
    %cst_19 = arith.constant 0.000000e+00 : f32
    %45 = vector.broadcast %cst_19 : f32 to vector<16x128xf32>
    %46 = arith.maximumf %44, %45 : vector<16x128xf32>
    %47 = vector.shape_cast %46 : vector<16x128xf32> to vector<1x16x128xf32>
    %c0_20 = arith.constant 0 : index
    %c0_21 = arith.constant 0 : index
    %c0_22 = arith.constant 0 : index
    %48 = vector.load %arg6[%c0_20, %c0_21, %c0_22] : memref<1x16x128xf32, #tpu.memory_space<vmem>>, vector<1x16x128xf32>
    tpu.vector_store %arg6[%c0_20, %c0_21, %c0_22], %47 {strides = array<i32>} : memref<1x16x128xf32, #tpu.memory_space<vmem>>, vector<1x16x128xf32>,
    return
  }
  func.func @transform_0(%arg0: i32) -> (i32, i32, i32) {
    %c0_i32 = arith.constant 0 : i32
    %c0_i32_0 = arith.constant 0 : i32
    %c0_i32_1 = arith.constant 0 : i32
    return %arg0, %c0_i32, %c0_i32_0 : i32, i32, i32
  }
  func.func @transform_1(%arg0: i32) -> (i32, i32) {
    %c0_i32 = arith.constant 0 : i32
    %c0_i32_0 = arith.constant 0 : i32
    %c0_i32_1 = arith.constant 0 : i32
    return %c0_i32, %c0_i32_0 : i32, i32
  }
  func.func @transform_2(%arg0: i32) -> (i32, i32) {
    %c0_i32 = arith.constant 0 : i32
    %c0_i32_0 = arith.constant 0 : i32
    %c0_i32_1 = arith.constant 0 : i32
    return %c0_i32, %c0_i32_0 : i32, i32
  }
  func.func @transform_3(%arg0: i32) -> (i32, i32) {
    %c0_i32 = arith.constant 0 : i32
    %c0_i32_0 = arith.constant 0 : i32
    %c0_i32_1 = arith.constant 0 : i32
    return %c0_i32, %c0_i32_0 : i32, i32
  }
  func.func @transform_4(%arg0: i32) -> (i32, i32) {
    %c0_i32 = arith.constant 0 : i32
    %c0_i32_0 = arith.constant 0 : i32
    %c0_i32_1 = arith.constant 0 : i32
    return %c0_i32, %c0_i32_0 : i32, i32
  }
  func.func @transform_5(%arg0: i32) -> (i32, i32, i32) {
    %c0_i32 = arith.constant 0 : i32
    %c0_i32_0 = arith.constant 0 : i32
    %c0_i32_1 = arith.constant 0 : i32
    return %arg0, %c0_i32, %c0_i32_0 : i32, i32, i32
  }
}

</mosaic_0001>

<llo_original>
// kernel: basic_block_forward.1
$region0: #{basic_block_forward.1}
  #allocation0 [shape = 'u32[]', space=smem, size = 0x4, offset = 0x4, fixed_abs, tag = 'smem constant byte address 0x4 - core index']
  #allocation1 [shape = 'u32[144,128]{1,0:T(1,128)}', space=vmem, size = 0x12000, scoped, tag = 'internal scratch']
  %s0 = inlined_call_operand.vmem [shape: f32[2,16,128], index: 0, kind: input, shape index: {}]
  %s1 = inlined_call_operand.vmem [shape: bf16[128,384], index: 1, kind: input, shape index: {}]
  %s2 = inlined_call_operand.vmem [shape: f32[1,128], index: 2, kind: input, shape index: {}]
  %s3 = inlined_call_operand.vmem [shape: bf16[128,384], index: 3, kind: input, shape index: {}]
  %s4 = inlined_call_operand.vmem [shape: f32[1,128], index: 4, kind: input, shape index: {}]
  %s5 = inlined_call_operand.vmem [shape: f32[2,16,128], index: 5, kind: output, shape index: {}]
  %s6 = sld [smem:[#allocation0]]
  $region53: #{basic_block_forward.1} parent=0
    _
  %s8 = ssub.s32 1, %s6
  %s9 = scalar_select 0, %s8, %s6
  loop: start=0, step=1, limit=4
  $region2: #{basic_block_forward.1} parent=0 // loop_pre_header
    _
  $region3: #{basic_block_forward.1} parent=0 // loop_header
    %s11 = sphi 0, %s15
    %p12 = scmp.ge.s32.totalorder %s11, 4
    %s21 = sphi 0, %s23
    %s24 = sphi 0, %s21
    %s25 = sphi 0, %s24
    %s41 = sphi 0, %s25
    %s45 = sphi 0, %s45
    %s47 = sphi 0, %s45
    %s48 = sphi 0, %s47
    %s62 = sphi 0, %s48
    %s66 = sphi 0, %s66
    %s68 = sphi 0, %s66
    %s69 = sphi 0, %s68
    %s83 = sphi 0, %s69
    %s87 = sphi 0, %s87
    %s89 = sphi 0, %s87
    %s90 = sphi 0, %s89
    %s104 = sphi 0, %s90
    %s108 = sphi 0, %s108
    %s110 = sphi 0, %s108
    %s111 = sphi 0, %s110
    %s125 = sphi 0, %s111
    %s131 = sphi 0, %s133
    %s134 = sphi 0, %s131
    %s135 = sphi 0, %s134
    %s151 = sphi 0, %s135
  $region4: #{basic_block_forward.1} parent=0 // loop_header_branch
    %14 = sbr.rel (%p12) target = $region8
  $region5: #{basic_block_forward.1} parent=0 // loop_body
    %s16 = ssub.s32 %s11, 1
    %s17 = ssub.s32 %s11, 2
    %s18 = sadd.s32 %s11, 1
    %s19 = ssub.s32 %s11, %s18
    %p20 = scmp.eq.s32.totalorder %s19, 0
    %s22 = sadd.s32 %s21, 1
    %s23 = scalar_select %p20, %s21, %s22
    %p26 = pneg %p20
    %p27 = scmp.eq.s32.totalorder %s11, 1
    %p28 = por %p26, %p27
    %p29 = scmp.ne.s32.totalorder %s21, %s24
    %p30 = scmp.eq.s32.totalorder %s11, 0
    %p31 = por %p29, %p30
    %p32 = scmp.ne.s32.totalorder %s21, %s24
    %p33 = scmp.eq.s32.totalorder %s16, 1
    %p34 = por %p32, %p33
    %p35 = scmp.ne.s32.totalorder %s24, %s25
    %p36 = scmp.eq.s32.totalorder %s16, 0
    %p37 = por %p35, %p36
    %p38 = scmp.ne.s32.totalorder %s24, %s25
    %p39 = scmp.eq.s32.totalorder %s17, 1
    %p40 = por %p38, %p39
    %p42 = scmp.ne.s32.totalorder %s25, %s41
    %p43 = scmp.eq.s32.totalorder %s17, 0
    %p44 = por %p42, %p43
    %s46 = sadd.s32 %s45, 1
    %p49 = scmp.eq.s32.totalorder %s11, 1
    %p50 = scmp.ne.s32.totalorder %s45, %s47
    %p51 = scmp.eq.s32.totalorder %s11, 0
    %p52 = por %p50, %p51
    %p53 = scmp.ne.s32.totalorder %s45, %s47
    %p54 = scmp.eq.s32.totalorder %s16, 1
    %p55 = por %p53, %p54
    %p56 = scmp.ne.s32.totalorder %s47, %s48
    %p57 = scmp.eq.s32.totalorder %s16, 0
    %p58 = por %p56, %p57
    %p59 = scmp.ne.s32.totalorder %s47, %s48
    %p60 = scmp.eq.s32.totalorder %s17, 1
    %p61 = por %p59, %p60
    %p63 = scmp.ne.s32.totalorder %s48, %s62
    %p64 = scmp.eq.s32.totalorder %s17, 0
    %p65 = por %p63, %p64
    %s67 = sadd.s32 %s66, 1
    %p70 = scmp.eq.s32.totalorder %s11, 1
    %p71 = scmp.ne.s32.totalorder %s66, %s68
    %p72 = scmp.eq.s32.totalorder %s11, 0
    %p73 = por %p71, %p72
    %p74 = scmp.ne.s32.totalorder %s66, %s68
    %p75 = scmp.eq.s32.totalorder %s16, 1
    %p76 = por %p74, %p75
    %p77 = scmp.ne.s32.totalorder %s68, %s69
    %p78 = scmp.eq.s32.totalorder %s16, 0
    %p79 = por %p77, %p78
    %p80 = scmp.ne.s32.totalorder %s68, %s69
    %p81 = scmp.eq.s32.totalorder %s17, 1
    %p82 = por %p80, %p81
    %p84 = scmp.ne.s32.totalorder %s69, %s83
    %p85 = scmp.eq.s32.totalorder %s17, 0
    %p86 = por %p84, %p85
    %s88 = sadd.s32 %s87, 1
    %p91 = scmp.eq.s32.totalorder %s11, 1
    %p92 = scmp.ne.s32.totalorder %s87, %s89
    %p93 = scmp.eq.s32.totalorder %s11, 0
    %p94 = por %p92, %p93
    %p95 = scmp.ne.s32.totalorder %s87, %s89
    %p96 = scmp.eq.s32.totalorder %s16, 1
    %p97 = por %p95, %p96
    %p98 = scmp.ne.s32.totalorder %s89, %s90
    %p99 = scmp.eq.s32.totalorder %s16, 0
    %p100 = por %p98, %p99
    %p101 = scmp.ne.s32.totalorder %s89, %s90
    %p102 = scmp.eq.s32.totalorder %s17, 1
    %p103 = por %p101, %p102
    %p105 = scmp.ne.s32.totalorder %s90, %s104
    %p106 = scmp.eq.s32.totalorder %s17, 0
    %p107 = por %p105, %p106
    %s109 = sadd.s32 %s108, 1
    %p112 = scmp.eq.s32.totalorder %s11, 1
    %p113 = scmp.ne.s32.totalorder %s108, %s110
    %p114 = scmp.eq.s32.totalorder %s11, 0
    %p115 = por %p113, %p114
    %p116 = scmp.ne.s32.totalorder %s108, %s110
    %p117 = scmp.eq.s32.totalorder %s16, 1
    %p118 = por %p116, %p117
    %p119 = scmp.ne.s32.totalorder %s110, %s111
    %p120 = scmp.eq.s32.totalorder %s16, 0
    %p121 = por %p119, %p120
    %p122 = scmp.ne.s32.totalorder %s110, %s111
    %p123 = scmp.eq.s32.totalorder %s17, 1
    %p124 = por %p122, %p123
    %p126 = scmp.ne.s32.totalorder %s111, %s125
    %p127 = scmp.eq.s32.totalorder %s17, 0
    %p128 = por %p126, %p127
    %s129 = ssub.s32 %s11, %s18
    %p130 = scmp.eq.s32.totalorder %s129, 0
    %s132 = sadd.s32 %s131, 1
    %s133 = scalar_select %p130, %s131, %s132
    %p136 = pneg %p130
    %p137 = scmp.eq.s32.totalorder %s11, 1
    %p138 = por %p136, %p137
    %p139 = scmp.ne.s32.totalorder %s131, %s134
    %p140 = scmp.eq.s32.totalorder %s11, 0
    %p141 = por %p139, %p140
    %p142 = scmp.ne.s32.totalorder %s131, %s134
    %p143 = scmp.eq.s32.totalorder %s16, 1
    %p144 = por %p142, %p143
    %p145 = scmp.ne.s32.totalorder %s134, %s135
    %p146 = scmp.eq.s32.totalorder %s16, 0
    %p147 = por %p145, %p146
    %p148 = scmp.ne.s32.totalorder %s134, %s135
    %p149 = scmp.eq.s32.totalorder %s17, 1
    %p150 = por %p148, %p149
    %p152 = scmp.ne.s32.totalorder %s135, %s151
    %p153 = scmp.eq.s32.totalorder %s17, 0
    %p154 = por %p152, %p153
    %p155 = scmp.le.s32.totalorder 1, %s11
    %p156 = scmp.lt.s32.totalorder %s11, 3
    %p157 = pnand %p155, %p156
    %p158 = pneg %p157
    // Predicated region
    $region9: #{basic_block_forward.1} parent=5 // pred_check
      _
    $region10: #{basic_block_forward.1} parent=5 // pred_check_branch
      %160 = sbr.rel (%p157) target = $region12
    $region11: #{basic_block_forward.1} parent=5 // pred_region
      %s161 = ssub.s32 %s11, 1
      // Predicated region
      $region13: #{basic_block_forward.1} parent=11 // pred_check
        %p162 = pneg %p58
      $region14: #{basic_block_forward.1} parent=11 // pred_check_branch
        %164 = sbr.rel (%p162) target = $region16
      $region15: #{basic_block_forward.1} parent=11 // pred_region
        _
      $region16: #{basic_block_forward.1} parent=11 // pred_fallthru
        _
      // Predicated region
      $region17: #{basic_block_forward.1} parent=11 // pred_check
        %p165 = pneg %p79
      $region18: #{basic_block_forward.1} parent=11 // pred_check_branch
        %167 = sbr.rel (%p165) target = $region20
      $region19: #{basic_block_forward.1} parent=11 // pred_region
        _
      $region20: #{basic_block_forward.1} parent=11 // pred_fallthru
        _
      // Predicated region
      $region21: #{basic_block_forward.1} parent=11 // pred_check
        %p168 = pneg %p100
      $region22: #{basic_block_forward.1} parent=11 // pred_check_branch
        %170 = sbr.rel (%p168) target = $region24
      $region23: #{basic_block_forward.1} parent=11 // pred_region
        _
      $region24: #{basic_block_forward.1} parent=11 // pred_fallthru
        _
      // Predicated region
      $region25: #{basic_block_forward.1} parent=11 // pred_check
        %p171 = pneg %p121
      $region26: #{basic_block_forward.1} parent=11 // pred_check_branch
        %173 = sbr.rel (%p171) target = $region28
      $region27: #{basic_block_forward.1} parent=11 // pred_region
        _
      $region28: #{basic_block_forward.1} parent=11 // pred_fallthru
        _
    $region12: #{basic_block_forward.1} parent=5 // pred_fallthru
      _
    %p174 = scmp.lt.s32.totalorder %s11, 2
    // Predicated region
    $region29: #{basic_block_forward.1} parent=5 // pred_check
      %p175 = pneg %p174
    $region30: #{basic_block_forward.1} parent=5 // pred_check_branch
      %177 = sbr.rel (%p175) target = $region32
    $region31: #{basic_block_forward.1} parent=5 // pred_region
      // Predicated region
      $region33: #{basic_block_forward.1} parent=31 // pred_check
        %p178 = pneg %p31
      $region34: #{basic_block_forward.1} parent=31 // pred_check_branch
        %180 = sbr.rel (%p178) target = $region36
      $region35: #{basic_block_forward.1} parent=31 // pred_region
        %p181 = scmp.lt.s32.totalorder %s11, 1
        %s182 = scalar_select %p181, %s11, 1
        %s183 = smul.addr %s182, 2
        %s184 = smul.addr %s183, 8
        %s185 = scalar_lea.vmem %s0, %s184
      $region36: #{basic_block_forward.1} parent=31 // pred_fallthru
        _
    $region32: #{basic_block_forward.1} parent=5 // pred_fallthru
      _
    %p186 = scmp.le.s32.totalorder 1, %s11
    %p187 = scmp.lt.s32.totalorder %s11, 3
    %p188 = pnand %p186, %p187
    %p189 = pneg %p188
    // Predicated region
    $region37: #{basic_block_forward.1} parent=5 // pred_check
      _
    $region38: #{basic_block_forward.1} parent=5 // pred_check_branch
      %191 = sbr.rel (%p188) target = $region40
    $region39: #{basic_block_forward.1} parent=5 // pred_region
      %s192 = ssub.s32 %s11, 1
      %p193 = scmp.lt.s32.totalorder %s16, 1
      %s194 = scalar_select %p193, %s16, 1
      %s195 = smul.addr %s194, 2
      %s196 = smul.addr %s195, 8
      %s197 = scalar_lea.vmem %s0, %s196
      %p198 = pneg %p37
      %p199 = pneg %p34
      %p200 = pneg %p58
      %p201 = pneg %p55
      %p202 = pneg %p79
      %p203 = pneg %p76
      %p204 = pneg %p100
      %p205 = pneg %p97
      %p206 = pneg %p121
      %p207 = pneg %p118
      %p208 = pneg %p147
      %p209 = pneg %p144
      %p210 = scmp.lt.s32.totalorder %s16, 1
      %s211 = scalar_select %p210, %s16, 1
      %s212 = smul.addr %s211, 2
      %s213 = smul.addr %s212, 8
      %s214 = scalar_lea.vmem %s5, %s213
      %p215 = scmp.lt.s32.totalorder %s16, 1
      %s216 = scalar_select %p215, %s16, 1
      %s217 = smul.addr %s216, 2
      %s218 = smul.addr %s217, 8
      %s219 = scalar_lea.vmem %s0, %s218
      %p220 = scmp.lt.s32.totalorder %s16, 1
      %s221 = scalar_select %p220, %s16, 1
      %s222 = smul.addr %s221, 2
      %s223 = smul.addr %s222, 8
      %s224 = scalar_lea.vmem %s5, %s223
      %v226 = vld [vmem:[%s219] sm:$0xff]
      %v227 = vld [vmem:[%s219 + $0x8] sm:$0xff]
      %v228 = vlaneseq
      %v229 = vshrl.u32 %v228, 7
      %v230 = vadd.s32 %v229, 8
      %vm231 = vcmp.eq.s32.totalorder %v229, 0
      %vm232 = vcmp.eq.s32.totalorder %v230, 0
      %vm233 = vcmp.eq.s32.totalorder %v229, 15
      %vm234 = vcmp.eq.s32.totalorder %v230, 15
      %v235 = vpack.c.bf16 %v227, %v226
      %v236 = vld [vmem:[%s1] sm:$0xff]
      %v237 = vld [vmem:[%s1 + $0x8] sm:$0xf]
      %v238 = vld [vmem:[%s1 + $0xc] sm:$0xff]
      %v239 = vld [vmem:[%s1 + $0x14] sm:$0xf]
      %v240 = vld [vmem:[%s1 + $0x18] sm:$0xff]
      %v241 = vld [vmem:[%s1 + $0x20] sm:$0xf]
      %v242 = vld [vmem:[%s1 + $0x24] sm:$0xff]
      %v243 = vld [vmem:[%s1 + $0x2c] sm:$0xf]
      %v244 = vld [vmem:[%s1 + $0x30] sm:$0xff]
      %v245 = vld [vmem:[%s1 + $0x38] sm:$0xf]
      %v246 = vld [vmem:[%s1 + $0x3c] sm:$0xff]
      %v247 = vld [vmem:[%s1 + $0x44] sm:$0xf]
      %v248 = vld [vmem:[%s1 + $0x48] sm:$0xff]
      %v249 = vld [vmem:[%s1 + $0x50] sm:$0xf]
      %v250 = vld [vmem:[%s1 + $0x54] sm:$0xff]
      %v251 = vld [vmem:[%s1 + $0x5c] sm:$0xf]
      %v252 = vld [vmem:[%s1 + $0x60] sm:$0xff]
      %v253 = vld [vmem:[%s1 + $0x68] sm:$0xf]
      %v254 = vld [vmem:[%s1 + $0x6c] sm:$0xff]
      %v255 = vld [vmem:[%s1 + $0x74] sm:$0xf]
      %v256 = vld [vmem:[%s1 + $0x78] sm:$0xff]
      %v257 = vld [vmem:[%s1 + $0x80] sm:$0xf]
      %v258 = vld [vmem:[%s1 + $0x84] sm:$0xff]
      %v259 = vld [vmem:[%s1 + $0x8c] sm:$0xf]
      %v260 = vld [vmem:[%s1 + $0x90] sm:$0xff]
      %v261 = vld [vmem:[%s1 + $0x98] sm:$0xf]
      %v262 = vld [vmem:[%s1 + $0x9c] sm:$0xff]
      %v263 = vld [vmem:[%s1 + $0xa4] sm:$0xf]
      %v264 = vld [vmem:[%s1 + $0xa8] sm:$0xff]
      %v265 = vld [vmem:[%s1 + $0xb0] sm:$0xf]
      %v266 = vld [vmem:[%s1 + $0xb4] sm:$0xff]
      %v267 = vld [vmem:[%s1 + $0xbc] sm:$0xf]
      %v300 = vunpack.c.l.b16 %v236
      %v301 = vunpack.c.h.b16 %v236
      %v302 = vunpack.c.l.b16 %v237
      %v303 = vunpack.c.l.b16 %v238
      %v304 = vunpack.c.h.b16 %v238
      %v305 = vunpack.c.l.b16 %v239
      %v306 = vunpack.c.l.b16 %v240
      %v307 = vunpack.c.h.b16 %v240
      %v308 = vunpack.c.l.b16 %v241
      %v309 = vunpack.c.l.b16 %v242
      %v310 = vunpack.c.h.b16 %v242
      %v311 = vunpack.c.l.b16 %v243
      %v312 = vunpack.c.l.b16 %v244
      %v313 = vunpack.c.h.b16 %v244
      %v314 = vunpack.c.l.b16 %v245
      %v315 = vunpack.c.l.b16 %v246
      %v316 = vunpack.c.h.b16 %v246
      %v317 = vunpack.c.l.b16 %v247
      %v318 = vunpack.c.l.b16 %v248
      %v319 = vunpack.c.h.b16 %v248
      %v320 = vunpack.c.l.b16 %v249
      %v321 = vunpack.c.l.b16 %v250
      %v322 = vunpack.c.h.b16 %v250
      %v323 = vunpack.c.l.b16 %v251
      %v324 = vunpack.c.l.b16 %v252
      %v325 = vunpack.c.h.b16 %v252
      %v326 = vunpack.c.l.b16 %v253
      %v327 = vunpack.c.l.b16 %v254
      %v328 = vunpack.c.h.b16 %v254
      %v329 = vunpack.c.l.b16 %v255
      %v330 = vunpack.c.l.b16 %v256
      %v331 = vunpack.c.h.b16 %v256
      %v332 = vunpack.c.l.b16 %v257
      %v333 = vunpack.c.l.b16 %v258
      %v334 = vunpack.c.h.b16 %v258
      %v335 = vunpack.c.l.b16 %v259
      %v336 = vunpack.c.l.b16 %v260
      %v337 = vunpack.c.h.b16 %v260
      %v338 = vunpack.c.l.b16 %v261
      %v339 = vunpack.c.l.b16 %v262
      %v340 = vunpack.c.h.b16 %v262
      %v341 = vunpack.c.l.b16 %v263
      %v342 = vunpack.c.l.b16 %v264
      %v343 = vunpack.c.h.b16 %v264
      %v344 = vunpack.c.l.b16 %v265
      %v345 = vunpack.c.l.b16 %v266
      %v346 = vunpack.c.h.b16 %v266
      %v347 = vunpack.c.l.b16 %v267
      %v348 = vpack.c.b16 %v303, %v300
      %v349 = vpack.c.b16 %v304, %v301
      %v350 = vpack.c.b16 %v305, %v302
      %v351 = vpack.c.b16 %v309, %v306
      %v352 = vpack.c.b16 %v310, %v307
      %v353 = vpack.c.b16 %v311, %v308
      %v354 = vpack.c.b16 %v315, %v312
      %v355 = vpack.c.b16 %v316, %v313
      %v356 = vpack.c.b16 %v317, %v314
      %v357 = vpack.c.b16 %v321, %v318
      %v358 = vpack.c.b16 %v322, %v319
      %v359 = vpack.c.b16 %v323, %v320
      %v360 = vpack.c.b16 %v327, %v324
      %v361 = vpack.c.b16 %v328, %v325
      %v362 = vpack.c.b16 %v329, %v326
      %v363 = vpack.c.b16 %v333, %v330
      %v364 = vpack.c.b16 %v334, %v331
      %v365 = vpack.c.b16 %v335, %v332
      %v366 = vpack.c.b16 %v339, %v336
      %v367 = vpack.c.b16 %v340, %v337
      %v368 = vpack.c.b16 %v341, %v338
      %v369 = vpack.c.b16 %v345, %v342
      %v370 = vpack.c.b16 %v346, %v343
      %v371 = vpack.c.b16 %v347, %v344
      %396 = vmatprep.subr.bf16.mxu0 %v370
      %397 = vmatpush1.bf16.msra.mxu0 %v369
      %398 = vmatprep.subr.bf16.mxu0 %v367
      %399 = vmatpush1.bf16.msra.mxu0 %v366
      %400 = vmatprep.subr.bf16.mxu0 %v364
      %401 = vmatpush1.bf16.msra.mxu0 %v363
      %402 = vmatprep.subr.bf16.mxu0 %v361
      %403 = vmatpush1.bf16.msra.mxu0 %v360
      %404 = vmatprep.subr.bf16.mxu0 %v358
      %405 = vmatpush1.bf16.msra.mxu0 %v357
      %406 = vmatprep.subr.bf16.mxu0 %v355
      %407 = vmatpush1.bf16.msra.mxu0 %v354
      %408 = vmatprep.subr.bf16.mxu0 %v352
      %409 = vmatpush1.bf16.msra.mxu0 %v351
      %410 = vmatprep.subr.bf16.mxu0 %v349
      %411 = vmatpush1.bf16.msra.mxu0 %v348
      %412 = vmatprep.subr.bf16.mxu0 0
      %413 = vmatpush2.bf16.msra.mxu0 0
      %414 = vmatprep.subr.bf16.mxu0 0
      %415 = vmatpush2.bf16.msra.mxu0 0
      %416 = vmatprep.subr.bf16.mxu0 0
      %417 = vmatpush2.bf16.msra.mxu0 0
      %418 = vmatprep.subr.bf16.mxu0 0
      %419 = vmatpush2.bf16.msra.mxu0 0
      %420 = vmatprep.subr.bf16.mxu0 0
      %421 = vmatpush2.bf16.msra.mxu0 0
      %422 = vmatprep.subr.bf16.mxu0 0
      %423 = vmatpush2.bf16.msra.mxu0 0
      %424 = vmatprep.subr.bf16.mxu0 0
      %425 = vmatpush2.bf16.msra.mxu0 0
      %426 = vmatprep.subr.bf16.mxu0 0
      %427 = vmatpush2.bf16.msra.mxu0 0
      %428 = vmatprep.mubr.bf16.mxu0 0
      %429 = vmatmul.mubr.bf16.gmra.mxu0 %v235
      %v430 = vpop.f32.mrf.mxu0
      %v431 = vadd.f32 0.0, %v430
      %v432 = vpop.f32.mrf.mxu0
      %v433 = vadd.f32 0.0, %v432
      %v434 = vpop.f32.mrf.mxu0
      %v435 = vadd.f32 0.0, %v434
      %v436 = vpop.f32.mrf.mxu0
      %v437 = vadd.f32 0.0, %v436
      %438 = vdwg.mxu0
      %439 = vmatprep.subr.bf16.mxu0 0
      %440 = vmatpush1.bf16.msra.mxu0 %v371
      %441 = vmatprep.subr.bf16.mxu0 0
      %442 = vmatpush1.bf16.msra.mxu0 %v368
      %443 = vmatprep.subr.bf16.mxu0 0
      %444 = vmatpush1.bf16.msra.mxu0 %v365
      %445 = vmatprep.subr.bf16.mxu0 0
      %446 = vmatpush1.bf16.msra.mxu0 %v362
      %447 = vmatprep.subr.bf16.mxu0 0
      %448 = vmatpush1.bf16.msra.mxu0 %v359
      %449 = vmatprep.subr.bf16.mxu0 0
      %450 = vmatpush1.bf16.msra.mxu0 %v356
      %451 = vmatprep.subr.bf16.mxu0 0
      %452 = vmatpush1.bf16.msra.mxu0 %v353
      %453 = vmatprep.subr.bf16.mxu0 0
      %454 = vmatpush1.bf16.msra.mxu0 %v350
      %455 = vmatprep.subr.bf16.mxu0 0
      %456 = vmatpush2.bf16.msra.mxu0 0
      %457 = vmatprep.subr.bf16.mxu0 0
      %458 = vmatpush2.bf16.msra.mxu0 0
      %459 = vmatprep.subr.bf16.mxu0 0
      %460 = vmatpush2.bf16.msra.mxu0 0
      %461 = vmatprep.subr.bf16.mxu0 0
      %462 = vmatpush2.bf16.msra.mxu0 0
      %463 = vmatprep.subr.bf16.mxu0 0
      %464 = vmatpush2.bf16.msra.mxu0 0
      %465 = vmatprep.subr.bf16.mxu0 0
      %466 = vmatpush2.bf16.msra.mxu0 0
      %467 = vmatprep.subr.bf16.mxu0 0
      %468 = vmatpush2.bf16.msra.mxu0 0
      %469 = vmatprep.subr.bf16.mxu0 0
      %470 = vmatpush2.bf16.msra.mxu0 0
      %471 = vmatprep.mubr.bf16.mxu0 0
      %472 = vmatmul.mubr.bf16.gmra.mxu0 %v235
      %v473 = vpop.f32.mrf.mxu0
      %v474 = vadd.f32 0.0, %v473
      %v475 = vpop.f32.mrf.mxu0
      %v476 = vpop.f32.mrf.mxu0
      %v477 = vadd.f32 0.0, %v476
      %v478 = vpop.f32.mrf.mxu0
      %479 = vdwg.mxu0
      %v480 = vrot.slane %v431, 7
      %v481 = vrot.slane %v435, 7
      %vm482 = vcmp.lt.s32.totalorder %v229, 1
      %v483 = vsel %vm482, %v480, %v481
      %v484 = vsel %vm482, %v481, %v480
      %v485 = vsel %vm231, 0.0, %v484
      %v486 = vsel %vm232, 0.0, %v483
      %v487 = vrot.slane %v474, 1
      %v488 = vrot.slane %v477, 1
      %vm489 = vcmp.lt.s32.totalorder %v229, 7
      %v490 = vsel %vm489, %v487, %v488
      %v491 = vsel %vm489, %v488, %v487
      %v492 = vsel %vm233, 0.0, %v490
      %v493 = vsel %vm234, 0.0, %v491
      %v494 = vld [vmem:[%s2] sm:$0x1]
      %v496 = vlaneseq
      %v497 = vshrl.u32 %v496, 7
      %v498 = vsub.s32 0, %v497
      %v499 = vrot.slane %v494, %v498
      %v501 = vadd.f32 %v499, %v433
      %v502 = vadd.f32 %v499, %v437
      %v503 = vadd.f32 %v501, %v485
      %v504 = vadd.f32 %v502, %v486
      %v505 = vadd.f32 %v503, %v492
      %v506 = vadd.f32 %v504, %v493
      %v507 = vmax.f32 %v505, 0.0
      %v508 = vmax.f32 %v506, 0.0
      %v509 = vpack.c.bf16 %v508, %v507
      %v510 = vld [vmem:[%s3] sm:$0xff]
      %v511 = vld [vmem:[%s3 + $0x8] sm:$0xf]
      %v512 = vld [vmem:[%s3 + $0xc] sm:$0xff]
      %v513 = vld [vmem:[%s3 + $0x14] sm:$0xf]
      %v514 = vld [vmem:[%s3 + $0x18] sm:$0xff]
      %v515 = vld [vmem:[%s3 + $0x20] sm:$0xf]
      %v516 = vld [vmem:[%s3 + $0x24] sm:$0xff]
      %v517 = vld [vmem:[%s3 + $0x2c] sm:$0xf]
      %v518 = vld [vmem:[%s3 + $0x30] sm:$0xff]
      %v519 = vld [vmem:[%s3 + $0x38] sm:$0xf]
      %v520 = vld [vmem:[%s3 + $0x3c] sm:$0xff]
      %v521 = vld [vmem:[%s3 + $0x44] sm:$0xf]
      %v522 = vld [vmem:[%s3 + $0x48] sm:$0xff]
      %v523 = vld [vmem:[%s3 + $0x50] sm:$0xf]
      %v524 = vld [vmem:[%s3 + $0x54] sm:$0xff]
      %v525 = vld [vmem:[%s3 + $0x5c] sm:$0xf]
      %v526 = vld [vmem:[%s3 + $0x60] sm:$0xff]
      %v527 = vld [vmem:[%s3 + $0x68] sm:$0xf]
      %v528 = vld [vmem:[%s3 + $0x6c] sm:$0xff]
      %v529 = vld [vmem:[%s3 + $0x74] sm:$0xf]
      %v530 = vld [vmem:[%s3 + $0x78] sm:$0xff]
      %v531 = vld [vmem:[%s3 + $0x80] sm:$0xf]
      %v532 = vld [vmem:[%s3 + $0x84] sm:$0xff]
      %v533 = vld [vmem:[%s3 + $0x8c] sm:$0xf]
      %v534 = vld [vmem:[%s3 + $0x90] sm:$0xff]
      %v535 = vld [vmem:[%s3 + $0x98] sm:$0xf]
      %v536 = vld [vmem:[%s3 + $0x9c] sm:$0xff]
      %v537 = vld [vmem:[%s3 + $0xa4] sm:$0xf]
      %v538 = vld [vmem:[%s3 + $0xa8] sm:$0xff]
      %v539 = vld [vmem:[%s3 + $0xb0] sm:$0xf]
      %v540 = vld [vmem:[%s3 + $0xb4] sm:$0xff]
      %v541 = vld [vmem:[%s3 + $0xbc] sm:$0xf]
      %v574 = vunpack.c.l.b16 %v510
      %v575 = vunpack.c.h.b16 %v510
      %v576 = vunpack.c.l.b16 %v511
      %v577 = vunpack.c.l.b16 %v512
      %v578 = vunpack.c.h.b16 %v512
      %v579 = vunpack.c.l.b16 %v513
      %v580 = vunpack.c.l.b16 %v514
      %v581 = vunpack.c.h.b16 %v514
      %v582 = vunpack.c.l.b16 %v515
      %v583 = vunpack.c.l.b16 %v516
      %v584 = vunpack.c.h.b16 %v516
      %v585 = vunpack.c.l.b16 %v517
      %v586 = vunpack.c.l.b16 %v518
      %v587 = vunpack.c.h.b16 %v518
      %v588 = vunpack.c.l.b16 %v519
      %v589 = vunpack.c.l.b16 %v520
      %v590 = vunpack.c.h.b16 %v520
      %v591 = vunpack.c.l.b16 %v521
      %v592 = vunpack.c.l.b16 %v522
      %v593 = vunpack.c.h.b16 %v522
      %v594 = vunpack.c.l.b16 %v523
      %v595 = vunpack.c.l.b16 %v524
      %v596 = vunpack.c.h.b16 %v524
      %v597 = vunpack.c.l.b16 %v525
      %v598 = vunpack.c.l.b16 %v526
      %v599 = vunpack.c.h.b16 %v526
      %v600 = vunpack.c.l.b16 %v527
      %v601 = vunpack.c.l.b16 %v528
      %v602 = vunpack.c.h.b16 %v528
      %v603 = vunpack.c.l.b16 %v529
      %v604 = vunpack.c.l.b16 %v530
      %v605 = vunpack.c.h.b16 %v530
      %v606 = vunpack.c.l.b16 %v531
      %v607 = vunpack.c.l.b16 %v532
      %v608 = vunpack.c.h.b16 %v532
      %v609 = vunpack.c.l.b16 %v533
      %v610 = vunpack.c.l.b16 %v534
      %v611 = vunpack.c.h.b16 %v534
      %v612 = vunpack.c.l.b16 %v535
      %v613 = vunpack.c.l.b16 %v536
      %v614 = vunpack.c.h.b16 %v536
      %v615 = vunpack.c.l.b16 %v537
      %v616 = vunpack.c.l.b16 %v538
      %v617 = vunpack.c.h.b16 %v538
      %v618 = vunpack.c.l.b16 %v539
      %v619 = vunpack.c.l.b16 %v540
      %v620 = vunpack.c.h.b16 %v540
      %v621 = vunpack.c.l.b16 %v541
      %v622 = vpack.c.b16 %v577, %v574
      %v623 = vpack.c.b16 %v578, %v575
      %v624 = vpack.c.b16 %v579, %v576
      %v625 = vpack.c.b16 %v583, %v580
      %v626 = vpack.c.b16 %v584, %v581
      %v627 = vpack.c.b16 %v585, %v582
      %v628 = vpack.c.b16 %v589, %v586
      %v629 = vpack.c.b16 %v590, %v587
      %v630 = vpack.c.b16 %v591, %v588
      %v631 = vpack.c.b16 %v595, %v592
      %v632 = vpack.c.b16 %v596, %v593
      %v633 = vpack.c.b16 %v597, %v594
      %v634 = vpack.c.b16 %v601, %v598
      %v635 = vpack.c.b16 %v602, %v599
      %v636 = vpack.c.b16 %v603, %v600
      %v637 = vpack.c.b16 %v607, %v604
      %v638 = vpack.c.b16 %v608, %v605
      %v639 = vpack.c.b16 %v609, %v606
      %v640 = vpack.c.b16 %v613, %v610
      %v641 = vpack.c.b16 %v614, %v611
      %v642 = vpack.c.b16 %v615, %v612
      %v643 = vpack.c.b16 %v619, %v616
      %v644 = vpack.c.b16 %v620, %v617
      %v645 = vpack.c.b16 %v621, %v618
      %670 = vmatprep.subr.bf16.mxu0 %v644
      %671 = vmatpush1.bf16.msra.mxu0 %v643
      %672 = vmatprep.subr.bf16.mxu0 %v641
      %673 = vmatpush1.bf16.msra.mxu0 %v640
      %674 = vmatprep.subr.bf16.mxu0 %v638
      %675 = vmatpush1.bf16.msra.mxu0 %v637
      %676 = vmatprep.subr.bf16.mxu0 %v635
      %677 = vmatpush1.bf16.msra.mxu0 %v634
      %678 = vmatprep.subr.bf16.mxu0 %v632
      %679 = vmatpush1.bf16.msra.mxu0 %v631
      %680 = vmatprep.subr.bf16.mxu0 %v629
      %681 = vmatpush1.bf16.msra.mxu0 %v628
      %682 = vmatprep.subr.bf16.mxu0 %v626
      %683 = vmatpush1.bf16.msra.mxu0 %v625
      %684 = vmatprep.subr.bf16.mxu0 %v623
      %685 = vmatpush1.bf16.msra.mxu0 %v622
      %686 = vmatprep.subr.bf16.mxu0 0
      %687 = vmatpush2.bf16.msra.mxu0 0
      %688 = vmatprep.subr.bf16.mxu0 0
      %689 = vmatpush2.bf16.msra.mxu0 0
      %690 = vmatprep.subr.bf16.mxu0 0
      %691 = vmatpush2.bf16.msra.mxu0 0
      %692 = vmatprep.subr.bf16.mxu0 0
      %693 = vmatpush2.bf16.msra.mxu0 0
      %694 = vmatprep.subr.bf16.mxu0 0
      %695 = vmatpush2.bf16.msra.mxu0 0
      %696 = vmatprep.subr.bf16.mxu0 0
      %697 = vmatpush2.bf16.msra.mxu0 0
      %698 = vmatprep.subr.bf16.mxu0 0
      %699 = vmatpush2.bf16.msra.mxu0 0
      %700 = vmatprep.subr.bf16.mxu0 0
      %701 = vmatpush2.bf16.msra.mxu0 0
      %702 = vmatprep.mubr.bf16.mxu0 0
      %703 = vmatmul.mubr.bf16.gmra.mxu0 %v509
      %v704 = vpop.f32.mrf.mxu0
      %v705 = vadd.f32 0.0, %v704
      %v706 = vpop.f32.mrf.mxu0
      %v707 = vadd.f32 0.0, %v706
      %v708 = vpop.f32.mrf.mxu0
      %v709 = vadd.f32 0.0, %v708
      %v710 = vpop.f32.mrf.mxu0
      %v711 = vadd.f32 0.0, %v710
      %712 = vdwg.mxu0
      %713 = vmatprep.subr.bf16.mxu0 0
      %714 = vmatpush1.bf16.msra.mxu0 %v645
      %715 = vmatprep.subr.bf16.mxu0 0
      %716 = vmatpush1.bf16.msra.mxu0 %v642
      %717 = vmatprep.subr.bf16.mxu0 0
      %718 = vmatpush1.bf16.msra.mxu0 %v639
      %719 = vmatprep.subr.bf16.mxu0 0
      %720 = vmatpush1.bf16.msra.mxu0 %v636
      %721 = vmatprep.subr.bf16.mxu0 0
      %722 = vmatpush1.bf16.msra.mxu0 %v633
      %723 = vmatprep.subr.bf16.mxu0 0
      %724 = vmatpush1.bf16.msra.mxu0 %v630
      %725 = vmatprep.subr.bf16.mxu0 0
      %726 = vmatpush1.bf16.msra.mxu0 %v627
      %727 = vmatprep.subr.bf16.mxu0 0
      %728 = vmatpush1.bf16.msra.mxu0 %v624
      %729 = vmatprep.subr.bf16.mxu0 0
      %730 = vmatpush2.bf16.msra.mxu0 0
      %731 = vmatprep.subr.bf16.mxu0 0
      %732 = vmatpush2.bf16.msra.mxu0 0
      %733 = vmatprep.subr.bf16.mxu0 0
      %734 = vmatpush2.bf16.msra.mxu0 0
      %735 = vmatprep.subr.bf16.mxu0 0
      %736 = vmatpush2.bf16.msra.mxu0 0
      %737 = vmatprep.subr.bf16.mxu0 0
      %738 = vmatpush2.bf16.msra.mxu0 0
      %739 = vmatprep.subr.bf16.mxu0 0
      %740 = vmatpush2.bf16.msra.mxu0 0
      %741 = vmatprep.subr.bf16.mxu0 0
      %742 = vmatpush2.bf16.msra.mxu0 0
      %743 = vmatprep.subr.bf16.mxu0 0
      %744 = vmatpush2.bf16.msra.mxu0 0
      %745 = vmatprep.mubr.bf16.mxu0 0
      %746 = vmatmul.mubr.bf16.gmra.mxu0 %v509
      %v747 = vpop.f32.mrf.mxu0
      %v748 = vadd.f32 0.0, %v747
      %v749 = vpop.f32.mrf.mxu0
      %v750 = vpop.f32.mrf.mxu0
      %v751 = vadd.f32 0.0, %v750
      %v752 = vpop.f32.mrf.mxu0
      %753 = vdwg.mxu0
      %v754 = vrot.slane %v705, 7
      %v755 = vrot.slane %v709, 7
      %v756 = vsel %vm482, %v754, %v755
      %v757 = vsel %vm482, %v755, %v754
      %v758 = vsel %vm231, 0.0, %v757
      %v759 = vsel %vm232, 0.0, %v756
      %v760 = vrot.slane %v748, 1
      %v761 = vrot.slane %v751, 1
      %v762 = vsel %vm489, %v760, %v761
      %v763 = vsel %vm489, %v761, %v760
      %v764 = vsel %vm233, 0.0, %v762
      %v765 = vsel %vm234, 0.0, %v763
      %v766 = vld [vmem:[%s4] sm:$0x1]
      %v768 = vlaneseq
      %v769 = vshrl.u32 %v768, 7
      %v770 = vsub.s32 0, %v769
      %v771 = vrot.slane %v766, %v770
      %v773 = vadd.f32 %v771, %v707
      %v774 = vadd.f32 %v771, %v711
      %v775 = vadd.f32 %v773, %v758
      %v776 = vadd.f32 %v774, %v759
      %v777 = vadd.f32 %v775, %v764
      %v778 = vadd.f32 %v776, %v765
      %v779 = vadd.f32 %v777, %v226
      %v780 = vadd.f32 %v778, %v227
      %v781 = vmax.f32 %v779, 0.0
      %v782 = vmax.f32 %v780, 0.0
      %783 = vst [vmem:[%s224] sm:$0xff] %v781
      %784 = vst [vmem:[%s224 + $0x8] sm:$0xff] %v782
      %p785 = scmp.lt.s32.totalorder %s16, 1
      %s786 = scalar_select %p785, %s16, 1
      %s787 = smul.addr %s786, 2
      %s788 = smul.addr %s787, 8
      %s789 = scalar_lea.vmem %s5, %s788
      // Predicated region
      $region41: #{basic_block_forward.1} parent=39 // pred_check
        %p790 = pneg %p144
      $region42: #{basic_block_forward.1} parent=39 // pred_check_branch
        %792 = sbr.rel (%p790) target = $region44
      $region43: #{basic_block_forward.1} parent=39 // pred_region
        _
      $region44: #{basic_block_forward.1} parent=39 // pred_fallthru
        _
    $region40: #{basic_block_forward.1} parent=5 // pred_fallthru
      _
    %p793 = scmp.le.s32.totalorder 2, %s11
    // Predicated region
    $region45: #{basic_block_forward.1} parent=5 // pred_check
      %p794 = pneg %p793
    $region46: #{basic_block_forward.1} parent=5 // pred_check_branch
      %796 = sbr.rel (%p794) target = $region48
    $region47: #{basic_block_forward.1} parent=5 // pred_region
      %s797 = ssub.s32 %s11, 2
      // Predicated region
      $region49: #{basic_block_forward.1} parent=47 // pred_check
        %p798 = pneg %p150
      $region50: #{basic_block_forward.1} parent=47 // pred_check_branch
        %800 = sbr.rel (%p798) target = $region52
      $region51: #{basic_block_forward.1} parent=47 // pred_region
        %p801 = scmp.lt.s32.totalorder %s17, 1
        %s802 = scalar_select %p801, %s17, 1
        %s803 = smul.addr %s802, 2
        %s804 = smul.addr %s803, 8
        %s805 = scalar_lea.vmem %s5, %s804
      $region52: #{basic_block_forward.1} parent=47 // pred_fallthru
        _
    $region48: #{basic_block_forward.1} parent=5 // pred_fallthru
      _
  $region6: #{basic_block_forward.1} parent=0 // loop_footer
    %s15 = sadd.s32 1, %s11
  $region7: #{basic_block_forward.1} parent=0 // loop_footer_branch
    %10 = sbr.rel target = $region3
  $region8: #{basic_block_forward.1} parent=0 // loop_exit
    _

</llo_original>
